<compile_context>
chip_gen: v6e
topology: v6e:2x2x1
jax: 0.10.0
libtpu: 0.0.40
codegen_flags: <defaults>
</compile_context>

<pallas_src>
import numpy as np
import jax
import jax.numpy as jnp
from jax.experimental import pallas as pl
from jax.experimental.pallas import tpu as pltpu


def _round_up(x, m):
    return ((x + m - 1) // m) * m


def _cdiv(a, b):
    return (a + b - 1) // b


# Keep the (pre-transposed, padded, bf16) encoder weight fully VMEM-resident when it is
# at most this many bytes (safe even with v7x's 64 MiB VMEM, accounting for its
# double-buffered allocation); otherwise stream (tile_k, E_pad) tiles.
_W_RESIDENT_MAX_BYTES = 8 * 1024 * 1024
_ROW_QUANTUM = 16  # bf16 sublane packing: keep node-tile rows a multiple of 16


# -------------------- Pallas kernel --------------------
def _make_encode_kernel(w_resident: bool, tile_k: int):
    def _encode_kernel(x_ref, wt_ref, xy_ref, desc_ref, out_ref):
        # x_ref:    (TN, TK)            log1p(counts), bf16, zero-padded
        # wt_ref:   (G_pad, EP)/(TK,EP) encoder W^T, bf16, zero-padded (resident/streamed)
        # xy_ref:   (TN, 2)             normalized, 100-scaled xy coords for this tile
        # desc_ref: (4,  EP)            rows = [bias, inv_denum_x, inv_denum_y, phase]
        # out_ref:  (TN, EP)            f32 output tile; doubles as the K-axis accumulator
        k = pl.program_id(1)

        if w_resident:
            start = pl.multiple_of(k * tile_k, tile_k)
            w = wt_ref[pl.ds(start, tile_k), :]
        else:
            w = wt_ref[...]
        acc = jnp.dot(x_ref[...], w, preferred_element_type=jnp.float32)

        @pl.when(k == 0)
        def _():
            out_ref[...] = acc

        @pl.when(k > 0)
        def _():
            out_ref[...] += acc

        @pl.when(k == pl.num_programs(1) - 1)
        def _():
            bias = desc_ref[0:1, :]
            inv_dx = desc_ref[1:2, :]
            inv_dy = desc_ref[2:3, :]
            phase = desc_ref[3:4, :]
            xy = xy_ref[...]
            # cellplm PE columns [x_sin | x_cos | y_sin | y_cos]:
            #   sin(coord / denum + phase), phase = pi/2 on the "cos" columns,
            #   x/y selection folded into inv_dx / inv_dy (zeros on the other half).
            angle = xy[:, 0:1] * inv_dx + xy[:, 1:2] * inv_dy + phase
            out_ref[...] += bias + jnp.sin(angle)

    return _encode_kernel


def _vmem_limit_bytes(tile_n, tile_k, g_pad, e_pad, w_resident):
    x_b = 2 * tile_n * tile_k * 2                          # bf16 x, double-buffered
    w_b = 2 * (g_pad if w_resident else tile_k) * e_pad * 2
    out_b = 2 * tile_n * e_pad * 4                         # f32 out, double-buffered
    small_b = 2 * (tile_n * 2 + 4 * e_pad) * 4             # xy + descriptor
    need = x_b + w_b + out_b + small_b
    return int(min(max(int(need * 1.5) + (4 << 20), 16 << 20), 48 << 20))


def encode_xe_plus_pe(x_counts, xy_norm, wt_bf16, desc, dim_embedding, *, tile_k, tile_n=512):
    """encoder(log1p(x)) + positional_encoding(xy_norm), tiled over (node tiles, gene tiles)."""
    N, G = x_counts.shape
    G_pad, E_pad = wt_bf16.shape
    assert G_pad % tile_k == 0 and E_pad % 128 == 0 and G_pad >= G

    # Balanced ragged-N tiling; >= 2 node tiles (when N allows) so the "parallel" grid
    # axis can shard across both v7x TensorCores.
    num_node_tiles = max(_cdiv(N, tile_n), 2 if N >= 2 * _ROW_QUANTUM else 1)
    tile_n_eff = _round_up(_cdiv(N, num_node_tiles), _ROW_QUANTUM)
    N_pad = tile_n_eff * num_node_tiles

    # Fused staging pass: log1p + bf16 cast (+ zero padding) in a single XLA op, so the
    # kernel streams half the x bytes and does no in-kernel log1p / cast.
    x_log = jnp.log1p(x_counts.astype(jnp.float32)).astype(jnp.bfloat16)
    if (N_pad, G_pad) != (N, G):
        x_log = jnp.zeros((N_pad, G_pad), jnp.bfloat16).at[:N, :G].set(x_log)
    xy_p = xy_norm.astype(jnp.float32)
    if N_pad != N:
        xy_p = jnp.zeros((N_pad, 2), jnp.float32).at[:N, :].set(xy_p)

    w_resident = (G_pad * E_pad * 2) <= _W_RESIDENT_MAX_BYTES
    if w_resident:
        # Constant block index -> DMA'd once, stays resident; kernel K-slices it.
        wt_spec = pl.BlockSpec((G_pad, E_pad), lambda i, k: (0, 0))
    else:
        wt_spec = pl.BlockSpec((tile_k, E_pad), lambda i, k: (k, 0))

    grid = (N_pad // tile_n_eff, G_pad // tile_k)
    out = pl.pallas_call(
        _make_encode_kernel(w_resident, tile_k),
        out_shape=jax.ShapeDtypeStruct((N_pad, E_pad), jnp.float32),
        grid=grid,
        in_specs=[
            pl.BlockSpec((tile_n_eff, tile_k), lambda i, k: (i, k)),   # bf16 log1p counts
            wt_spec,                                                    # bf16 W^T
            pl.BlockSpec((tile_n_eff, 2), lambda i, k: (i, 0)),         # xy tile
            pl.BlockSpec((4, E_pad), lambda i, k: (0, 0)),              # [bias,inv_dx,inv_dy,phase]
        ],
        out_specs=pl.BlockSpec((tile_n_eff, E_pad), lambda i, k: (i, 0)),
        compiler_params=pltpu.CompilerParams(
            dimension_semantics=("parallel", "arbitrary"),
            vmem_limit_bytes=_vmem_limit_bytes(tile_n_eff, tile_k, G_pad, E_pad, w_resident),
        ),
    )(x_log, wt_bf16, xy_p, desc)
    return out[:N, :dim_embedding]


# -------------------- Module wrapper --------------------
class SubgraphEmbeddingDisentTwoSepPallas:
    def __init__(self, num_genes, dim_embedding, dim_em_iscentralnode, num_celltypes,
                 flag_use_int_u, flag_use_spl_u, key, tile_n=512, tile_k=2048):
        assert dim_embedding % 4 == 0
        self.num_genes = num_genes
        self.dim_embedding = dim_embedding
        self.dim_em_iscentralnode = dim_em_iscentralnode
        self.num_celltypes = num_celltypes
        self.flag_use_int_u = flag_use_int_u
        self.flag_use_spl_u = flag_use_spl_u
        self.tile_n = tile_n

        # Padded tiling geometry (derived once; keeps kernel lane-/sublane-aligned).
        self.E_pad = _round_up(dim_embedding, 128)
        self.tile_k = min(tile_k, _round_up(num_genes, 128))
        self.G_pad = _round_up(num_genes, self.tile_k)

        kw, kb, ke = jax.random.split(key, 3)
        # nn.Linear(num_genes, dim_embedding): weight (E, G), bias (E,)
        bound = 1.0 / np.sqrt(num_genes)
        w = jax.random.uniform(kw, (dim_embedding, num_genes),
                               minval=-bound, maxval=bound, dtype=jnp.float32)
        b = jax.random.uniform(kb, (dim_embedding,),
                               minval=-bound, maxval=bound, dtype=jnp.float32)
        self.enc_w = w
        self.enc_b = b
        # Pre-transpose + pad + cast the encoder weight ONCE (avoids a per-forward
        # HBM transpose and halves weight traffic via bf16 MXU operands).
        self.enc_wt_bf16 = (
            jnp.zeros((self.G_pad, self.E_pad), jnp.bfloat16)
            .at[:num_genes, :dim_embedding].set(w.T.astype(jnp.bfloat16))
        )

        # Positional-encoding / bias descriptor, one (4, E_pad) array:
        #   row 0: bias, row 1: inv_denum for x columns, row 2: inv_denum for y columns,
        #   row 3: phase (pi/2 on cos columns).  Padded columns are 0 -> produce 0.
        dby4 = dim_embedding // 4
        denum = np.exp(np.arange(dby4, dtype=np.float32) / dby4 * np.log(10000.0))
        inv = (1.0 / denum).astype(np.float32)
        zeros = np.zeros(dby4, dtype=np.float32)
        half_pi = np.full(dby4, np.pi / 2.0, dtype=np.float32)
        inv_dx = np.concatenate([inv, inv, zeros, zeros])
        inv_dy = np.concatenate([zeros, zeros, inv, inv])
        phase = np.concatenate([zeros, half_pi, zeros, half_pi])
        desc = np.zeros((4, self.E_pad), dtype=np.float32)
        desc[0, :dim_embedding] = np.asarray(b)
        desc[1, :dim_embedding] = inv_dx
        desc[2, :dim_embedding] = inv_dy
        desc[3, :dim_embedding] = phase
        self.pe_desc = jnp.asarray(desc)

        # nn.Embedding(2, dim_em_iscentralnode): weight (2, D_c), N(0,1) init
        self.emb_iscentral = jax.random.normal(ke, (2, dim_em_iscentralnode), dtype=jnp.float32)

    def _position_xy_norm(self, n_id, ten_xy_absolute):
        # xy normalization done in plain JAX (tiny [N,2] reduction); sin(+phase) done in-kernel.
        ten_xy = ten_xy_absolute[n_id, :] + 0.0
        ten_xy = ten_xy - jnp.min(ten_xy, axis=0, keepdims=True)
        ten_xy = ten_xy / jnp.maximum(jnp.max(ten_xy, axis=0, keepdims=True), 0.0001)
        return 100.0 * ten_xy

    def forward(self, batch, prob_maskknowngenes, ten_xy_absolute):
        assert ten_xy_absolute.shape[0] > batch["x"].shape[0]
        x_counts = batch["x"]                               # [N, G] raw counts (dense)
        N = x_counts.shape[0]

        # ten_initmask is all-False in the reference forward -> no zeroing.
        # TODO(synk): the stochastic `prob_maskknowngenes` masking path uses np.random and is
        # immediately followed by `assert torch.all(a)` in the reference, so it is only valid
        # as a no-op (prob == 0); it is therefore not translated.
        assert prob_maskknowngenes == 0.0

        xy_norm = self._position_xy_norm(batch["n_id"], ten_xy_absolute)   # [N, 2]

        # Hot path in Pallas: (staged log1p/bf16) -> linear encoder (MXU, f32 acc) -> +bias +PE
        xe_plus_pe = encode_xe_plus_pe(
            x_counts, xy_norm, self.enc_wt_bf16, self.pe_desc, self.dim_embedding,
            tile_k=self.tile_k, tile_n=self.tile_n)                         # [N, E]

        # is-central-node embedding: indices = [1]*batch_size + [0]*(N-batch_size)
        idx = (jnp.arange(N) < batch["batch_size"]).astype(jnp.int32)
        em_iscentralnode = jnp.take(self.emb_iscentral, idx, axis=0)       # [N, D_c]

        dim_u_int = batch["INFLOWMETAINF"]["dim_u_int"]
        dim_u_spl = batch["INFLOWMETAINF"]["dim_u_spl"]
        assert batch["y"].shape[1] == dim_u_int + dim_u_spl
        ten_u_int = batch["y"][:, 0:dim_u_int] if self.flag_use_int_u else None
        ten_u_spl = batch["y"][:, dim_u_int:] if self.flag_use_spl_u else None

        list_em_final = [xe_plus_pe, em_iscentralnode]
        if self.flag_use_int_u:
            list_em_final.append(ten_u_int.astype(jnp.float32))
        if self.flag_use_spl_u:
            list_em_final.append(ten_u_spl.astype(jnp.float32))
        em_final = jnp.concatenate(list_em_final, axis=1)

        ten_manually_masked = jnp.zeros((N,), dtype=bool)   # ~all-False & ~all-True == all False
        return em_final, ten_manually_masked


# -------------------- Example run --------------------
if __name__ == "__main__":
    key = jax.random.PRNGKey(0)
    k_mod, k_x, k_y, k_xy = jax.random.split(key, 4)

    num_genes = 64
    dim_embedding = 32            # multiple of 4
    dim_em_iscentralnode = 8
    num_celltypes = 6
    dim_u_int, dim_u_spl = 4, 4

    N = 16                        # nodes in the subgraph batch
    batch_size = 4                # central nodes
    N_total = 24                  # total graph nodes (> N, per the module's assert)

    model = SubgraphEmbeddingDisentTwoSepPallas(
        num_genes=num_genes,
        dim_embedding=dim_embedding,
        dim_em_iscentralnode=dim_em_iscentralnode,
        num_celltypes=num_celltypes,
        flag_use_int_u=True,
        flag_use_spl_u=True,
        key=k_mod,
    )

    # Synthetic "batch" (stand-in for a pyg NeighborLoader batch).
    x_counts = jax.random.poisson(k_x, 3.0, (N, num_genes)).astype(jnp.float32)
    y = jax.random.normal(k_y, (N, dim_u_int + dim_u_spl), dtype=jnp.float32)
    n_id = jnp.arange(N, dtype=jnp.int32)           # subgraph node ids into the full graph
    ten_xy_absolute = jax.random.uniform(k_xy, (N_total, 2), dtype=jnp.float32) * 50.0

    batch = {
        "x": x_counts,
        "y": y,
        "n_id": n_id,
        "batch_size": batch_size,
        "INFLOWMETAINF": {"dim_u_int": dim_u_int, "dim_u_spl": dim_u_spl},
    }

    em_final, ten_manually_masked = model.forward(
        batch, prob_maskknowngenes=0.0, ten_xy_absolute=ten_xy_absolute
    )
    jax.block_until_ready(em_final)
    jax.block_until_ready(ten_manually_masked)

    expected_cols = dim_embedding + dim_em_iscentralnode + dim_u_int + dim_u_spl
    assert em_final.shape == (N, expected_cols)
    assert ten_manually_masked.shape == (N,)
    assert not bool(jnp.any(ten_manually_masked))
    assert bool(jnp.all(jnp.isfinite(em_final)))

    # Sanity check of the Pallas hot path against a plain-JAX f32 reference (bf16 MXU tolerance).
    xy_ref = model._position_xy_norm(n_id, ten_xy_absolute)
    dby4 = dim_embedding // 4
    denum_ref = jnp.exp(jnp.arange(dby4, dtype=jnp.float32) / dby4 * np.log(10000.0))[None, :]
    pe_ref = jnp.concatenate([
        jnp.sin(xy_ref[:, 0:1] / denum_ref), jnp.cos(xy_ref[:, 0:1] / denum_ref),
        jnp.sin(xy_ref[:, 1:2] / denum_ref), jnp.cos(xy_ref[:, 1:2] / denum_ref)], axis=1)
    xe_ref = jnp.log1p(x_counts) @ model.enc_w.T + model.enc_b + pe_ref
    assert bool(jnp.max(jnp.abs(em_final[:, :dim_embedding] - xe_ref)) < 5e-2)

    print("KERNEL_OK")
</pallas_src>

<mosaic_0001>
module attributes {stable_mosaic.version = 11 : i64} {
  func.func @_encode_kernel(%arg0: i32, %arg1: i32, %arg2: memref<16x128xbf16, #tpu.memory_space<vmem>>, %arg3: memref<128x128xbf16, #tpu.memory_space<vmem>>, %arg4: memref<16x2xf32, #tpu.memory_space<vmem>>, %arg5: memref<4x128xf32, #tpu.memory_space<vmem>>, %arg6: memref<16x128xf32, #tpu.memory_space<vmem>>) attributes {dimension_semantics = [#tpu.dimension_semantics<parallel>, #tpu.dimension_semantics<arbitrary>], iteration_bounds = array<i64: 1, 1>, scalar_prefetch = 0 : i64, scratch_operands = 0 : i64, tpu.core_type = #tpu.core_type<tc>, window_params = [{transform_indices = @transform_0, window_bounds = array<i64: 16, 128>}, {pipeline_mode = #tpu.pipeline_mode<synchronous>, transform_indices = @transform_1, window_bounds = array<i64: 128, 128>}, {transform_indices = @transform_2, window_bounds = array<i64: 16, 2>}, {pipeline_mode = #tpu.pipeline_mode<synchronous>, transform_indices = @transform_3, window_bounds = array<i64: 4, 128>}, {transform_indices = @transform_4, window_bounds = array<i64: 16, 128>}]} {
    %c128_i32 = arith.constant 128 : i32
    %0 = arith.muli %arg1, %c128_i32 : i32
    %1 = tpu.assume_multiple %0, 128 : i32
    %2 = arith.index_cast %1 : i32 to index
    %c0 = arith.constant 0 : index
    %3 = vector.load %arg3[%2, %c0] : memref<128x128xbf16, #tpu.memory_space<vmem>>, vector<128x128xbf16>
    %c0_0 = arith.constant 0 : index
    %c0_1 = arith.constant 0 : index
    %4 = vector.load %arg2[%c0_0, %c0_1] : memref<16x128xbf16, #tpu.memory_space<vmem>>, vector<16x128xbf16>
    %cst = arith.constant dense<0.000000e+00> : vector<16x128xf32>
    %5 = tpu.matmul %4, %3, %cst {dimension_numbers = #tpu.dot_dimension_numbers<[1], [0], [0], [1], [0, 0, 1, 1], [], []>} : vector<16x128xbf16>, vector<128x128xbf16>, vector<16x128xf32> -> vector<16x128xf32>
    %c0_i32 = arith.constant 0 : i32
    %6 = arith.cmpi eq, %arg1, %c0_i32 : i32
    %7 = arith.extui %6 : i1 to i32
    %c0_i32_2 = arith.constant 0 : i32
    %8 = arith.cmpi ne, %7, %c0_i32_2 : i32
    scf.if %8 {
      %c0_7 = arith.constant 0 : index
      %c0_8 = arith.constant 0 : index
      %15 = vector.load %arg6[%c0_7, %c0_8] : memref<16x128xf32, #tpu.memory_space<vmem>>, vector<16x128xf32>
      tpu.vector_store %arg6[%c0_7, %c0_8], %5 {strides = array<i32>} : memref<16x128xf32, #tpu.memory_space<vmem>>, vector<16x128xf32>,
    } else {
    }
    %c0_i32_3 = arith.constant 0 : i32
    %9 = arith.cmpi sgt, %arg1, %c0_i32_3 : i32
    %10 = arith.extui %9 : i1 to i32
    %c0_i32_4 = arith.constant 0 : i32
    %11 = arith.cmpi ne, %10, %c0_i32_4 : i32
    scf.if %11 {
      %c0_7 = arith.constant 0 : index
      %c0_8 = arith.constant 0 : index
      %15 = vector.load %arg6[%c0_7, %c0_8] : memref<16x128xf32, #tpu.memory_space<vmem>>, vector<16x128xf32>
      %16 = arith.addf %15, %5 : vector<16x128xf32>
      %c0_9 = arith.constant 0 : index
      %c0_10 = arith.constant 0 : index
      %17 = vector.load %arg6[%c0_9, %c0_10] : memref<16x128xf32, #tpu.memory_space<vmem>>, vector<16x128xf32>
      tpu.vector_store %arg6[%c0_9, %c0_10], %16 {strides = array<i32>} : memref<16x128xf32, #tpu.memory_space<vmem>>, vector<16x128xf32>,
    } else {
    }
    %c0_i32_5 = arith.constant 0 : i32
    %12 = arith.cmpi eq, %arg1, %c0_i32_5 : i32
    %13 = arith.extui %12 : i1 to i32
    %c0_i32_6 = arith.constant 0 : i32
    %14 = arith.cmpi ne, %13, %c0_i32_6 : i32
    scf.if %14 {
      %c0_7 = arith.constant 0 : index
      %c0_8 = arith.constant 0 : index
      %15 = vector.load %arg5[%c0_7, %c0_8] : memref<4x128xf32, #tpu.memory_space<vmem>>, vector<1x128xf32>
      %c1 = arith.constant 1 : index
      %c0_9 = arith.constant 0 : index
      %16 = vector.load %arg5[%c1, %c0_9] : memref<4x128xf32, #tpu.memory_space<vmem>>, vector<1x128xf32>
      %c2 = arith.constant 2 : index
      %c0_10 = arith.constant 0 : index
      %17 = vector.load %arg5[%c2, %c0_10] : memref<4x128xf32, #tpu.memory_space<vmem>>, vector<1x128xf32>
      %c3 = arith.constant 3 : index
      %c0_11 = arith.constant 0 : index
      %18 = vector.load %arg5[%c3, %c0_11] : memref<4x128xf32, #tpu.memory_space<vmem>>, vector<1x128xf32>
      %c0_12 = arith.constant 0 : index
      %c0_13 = arith.constant 0 : index
      %19 = vector.load %arg4[%c0_12, %c0_13] : memref<16x2xf32, #tpu.memory_space<vmem>>, vector<16x2xf32>
      %20 = vector.extract_strided_slice %19 {offsets = [0, 0], sizes = [16, 1], strides = [1, 1]} : vector<16x2xf32> to vector<16x1xf32>
      %21 = vector.broadcast %20 : vector<16x1xf32> to vector<16x128xf32>
      %22 = vector.broadcast %16 : vector<1x128xf32> to vector<16x128xf32>
      %23 = arith.mulf %21, %22 : vector<16x128xf32>
      %24 = vector.extract_strided_slice %19 {offsets = [0, 1], sizes = [16, 1], strides = [1, 1]} : vector<16x2xf32> to vector<16x1xf32>
      %25 = vector.broadcast %24 : vector<16x1xf32> to vector<16x128xf32>
      %26 = vector.broadcast %17 : vector<1x128xf32> to vector<16x128xf32>
      %27 = arith.mulf %25, %26 : vector<16x128xf32>
      %28 = arith.addf %23, %27 : vector<16x128xf32>
      %29 = vector.broadcast %18 : vector<1x128xf32> to vector<16x128xf32>
      %30 = arith.addf %28, %29 : vector<16x128xf32>
      %c0_14 = arith.constant 0 : index
      %c0_15 = arith.constant 0 : index
      %31 = vector.load %arg6[%c0_14, %c0_15] : memref<16x128xf32, #tpu.memory_space<vmem>>, vector<16x128xf32>
      %32 = math.sin %30 : vector<16x128xf32>
      %33 = vector.broadcast %15 : vector<1x128xf32> to vector<16x128xf32>
      %34 = arith.addf %33, %32 : vector<16x128xf32>
      %35 = arith.addf %31, %34 : vector<16x128xf32>
      %c0_16 = arith.constant 0 : index
      %c0_17 = arith.constant 0 : index
      %36 = vector.load %arg6[%c0_16, %c0_17] : memref<16x128xf32, #tpu.memory_space<vmem>>, vector<16x128xf32>
      tpu.vector_store %arg6[%c0_16, %c0_17], %35 {strides = array<i32>} : memref<16x128xf32, #tpu.memory_space<vmem>>, vector<16x128xf32>,
    } else {
    }
    return
  }
  func.func @transform_0(%arg0: i32, %arg1: i32) -> (i32, i32) {
    %c0_i32 = arith.constant 0 : i32
    return %arg0, %arg1 : i32, i32
  }
  func.func @transform_1(%arg0: i32, %arg1: i32) -> (i32, i32) {
    %c0_i32 = arith.constant 0 : i32
    %c0_i32_0 = arith.constant 0 : i32
    %c0_i32_1 = arith.constant 0 : i32
    return %c0_i32, %c0_i32_0 : i32, i32
  }
  func.func @transform_2(%arg0: i32, %arg1: i32) -> (i32, i32) {
    %c0_i32 = arith.constant 0 : i32
    %c0_i32_0 = arith.constant 0 : i32
    return %arg0, %c0_i32 : i32, i32
  }
  func.func @transform_3(%arg0: i32, %arg1: i32) -> (i32, i32) {
    %c0_i32 = arith.constant 0 : i32
    %c0_i32_0 = arith.constant 0 : i32
    %c0_i32_1 = arith.constant 0 : i32
    return %c0_i32, %c0_i32_0 : i32, i32
  }
  func.func @transform_4(%arg0: i32, %arg1: i32) -> (i32, i32) {
    %c0_i32 = arith.constant 0 : i32
    %c0_i32_0 = arith.constant 0 : i32
    return %arg0, %c0_i32 : i32, i32
  }
}

</mosaic_0001>

<llo_original>
// kernel: tpu_custom_call.1
$region0: #{tpu_custom_call.1}
  #allocation0 [shape = 'u32[]', space=smem, size = 0x4, offset = 0x4, fixed_abs, tag = 'smem constant byte address 0x4 - core index']
  #allocation1 [shape = 'u32[144,128]{1,0:T(1,128)}', space=vmem, size = 0x12000, scoped, tag = 'internal scratch']
  %s0 = inlined_call_operand.vmem [shape: bf16[16,128], index: 0, kind: input, shape index: {}]
  %s1 = inlined_call_operand.hbm [shape: bf16[128,128], index: 1, kind: input, shape index: {}]
  %s2 = inlined_call_operand.vmem [shape: f32[16,2], index: 2, kind: input, shape index: {}]
  %s3 = inlined_call_operand.vmem [shape: f32[4,128], index: 3, kind: input, shape index: {}]
  %s4 = inlined_call_operand.hbm [shape: f32[16,128], index: 4, kind: output, shape index: {}]
  %s5 = sld [smem:[#allocation0]]
  $region42: #{tpu_custom_call.1} parent=0
    _
  %s7 = ssub.s32 1, %s5
  %s8 = scalar_select 0, %s7, %s5
  $region1: #{tpu_custom_call.1} parent=0
    #allocation2 [shape = 'u8[32768]{0}', space=vmem, size = 0x8000, scoped, tag = 'input window, operand 1, single buffered']
    #allocation3 [shape = 's32[1]{0}', space=sflag, size = 0x4, scoped, tag = 'scoped memory for tpu_custom_call.1']
    #allocation4 [shape = 's32[1]{0}', space=sflag, size = 0x4, scoped, tag = 'scoped memory for tpu_custom_call.1']
    #allocation5 [shape = 'u8[8192]{0}', space=vmem, size = 0x2000, scoped, tag = 'output window, operand 0, single buffered']
    %9 = vsyncpa [#allocation3], 0
    %10 = vsyncpa [#allocation4], 0
    // Predicated region
    $region2: #{tpu_custom_call.1} parent=1 // pred_check
      _
    $region3: #{tpu_custom_call.1} parent=1 // pred_check_branch
      %12 = sbr.rel (0) target = $region5
    $region4: #{tpu_custom_call.1} parent=1 // pred_region
      _
    $region5: #{tpu_custom_call.1} parent=1 // pred_fallthru
      _
    // Predicated region
    $region6: #{tpu_custom_call.1} parent=1 // pred_check
      _
    $region7: #{tpu_custom_call.1} parent=1 // pred_check_branch
      %14 = sbr.rel (0) target = $region9
    $region8: #{tpu_custom_call.1} parent=1 // pred_region
      %s16 = ssub.s32 1024, 1024
      %17 = vsyncadd [#allocation3], %s16
      %s18 = sshll.u32 [#allocation2], 4
      %s19 = int_to_ptr.vmem [resolvable:$true] %s18
      %24 = dma.hbm_to_vmem [thread:$0]  %s1, 1024, %s19, [#allocation3], 64, 64, 4
    $region9: #{tpu_custom_call.1} parent=1 // pred_fallthru
      _
    // Predicated region
    $region10: #{tpu_custom_call.1} parent=1 // pred_check
      _
    $region11: #{tpu_custom_call.1} parent=1 // pred_check_branch
      %26 = sbr.rel (0) target = $region13
    $region12: #{tpu_custom_call.1} parent=1 // pred_region
      _
    $region13: #{tpu_custom_call.1} parent=1 // pred_fallthru
      _
    // Predicated region
    $region14: #{tpu_custom_call.1} parent=1 // pred_check
      _
    $region15: #{tpu_custom_call.1} parent=1 // pred_check_branch
      %28 = sbr.rel (0) target = $region17
    $region16: #{tpu_custom_call.1} parent=1 // pred_region
      _
    $region17: #{tpu_custom_call.1} parent=1 // pred_fallthru
      _
    // Predicated region
    $region18: #{tpu_custom_call.1} parent=1 // pred_check
      _
    $region19: #{tpu_custom_call.1} parent=1 // pred_check_branch
      %30 = sbr.rel (0) target = $region21
    $region20: #{tpu_custom_call.1} parent=1 // pred_region
      %31 = dma.done [#allocation3], 1024
    $region21: #{tpu_custom_call.1} parent=1 // pred_fallthru
      _
    %s33 = smul.u32 0, 128
    %s34 = sshra.s32 %s33, 3
    %s35 = sand.u32 %s33, 7
    %s36 = smul.addr %s34, 4
    %s37 = scalar_lea.vmem [#allocation2], %s36
    %v38 = vld [vmem:[%s37] sm:$0xf]
    %v39 = vld [vmem:[%s37 + $0x4] sm:$0xf]
    %v40 = vld [vmem:[%s37 + $0x8] sm:$0xf]
    %v41 = vld [vmem:[%s37 + $0xc] sm:$0xf]
    %v42 = vld [vmem:[%s37 + $0x10] sm:$0xf]
    %v43 = vld [vmem:[%s37 + $0x14] sm:$0xf]
    %v44 = vld [vmem:[%s37 + $0x18] sm:$0xf]
    %v45 = vld [vmem:[%s37 + $0x1c] sm:$0xf]
    %v46 = vld [vmem:[%s37 + $0x20] sm:$0xf]
    %v47 = vld [vmem:[%s37 + $0x24] sm:$0xf]
    %v48 = vld [vmem:[%s37 + $0x28] sm:$0xf]
    %v49 = vld [vmem:[%s37 + $0x2c] sm:$0xf]
    %v50 = vld [vmem:[%s37 + $0x30] sm:$0xf]
    %v51 = vld [vmem:[%s37 + $0x34] sm:$0xf]
    %v52 = vld [vmem:[%s37 + $0x38] sm:$0xf]
    %v53 = vld [vmem:[%s37 + $0x3c] sm:$0xf]
    %v54 = vld [vmem:[%s0] sm:$0xf]
    %v55 = vld [vmem:[%s0 + $0x4] sm:$0xf]
    %v58 = vunpack.c.l.b16 %v54
    %v59 = vunpack.c.l.b16 %v55
    %v60 = vpack.c.b16 %v59, %v58
    %v78 = vunpack.c.l.b16 %v38
    %v79 = vunpack.c.l.b16 %v39
    %v80 = vunpack.c.l.b16 %v40
    %v81 = vunpack.c.l.b16 %v41
    %v82 = vunpack.c.l.b16 %v42
    %v83 = vunpack.c.l.b16 %v43
    %v84 = vunpack.c.l.b16 %v44
    %v85 = vunpack.c.l.b16 %v45
    %v86 = vunpack.c.l.b16 %v46
    %v87 = vunpack.c.l.b16 %v47
    %v88 = vunpack.c.l.b16 %v48
    %v89 = vunpack.c.l.b16 %v49
    %v90 = vunpack.c.l.b16 %v50
    %v91 = vunpack.c.l.b16 %v51
    %v92 = vunpack.c.l.b16 %v52
    %v93 = vunpack.c.l.b16 %v53
    %v94 = vpack.c.b16 %v79, %v78
    %v95 = vpack.c.b16 %v81, %v80
    %v96 = vpack.c.b16 %v83, %v82
    %v97 = vpack.c.b16 %v85, %v84
    %v98 = vpack.c.b16 %v87, %v86
    %v99 = vpack.c.b16 %v89, %v88
    %v100 = vpack.c.b16 %v91, %v90
    %v101 = vpack.c.b16 %v93, %v92
    %110 = vmatprep.subr.bf16.mxu0 0
    %111 = vmatpush1.bf16.msra.mxu0 %v101
    %112 = vmatprep.subr.bf16.mxu0 0
    %113 = vmatpush1.bf16.msra.mxu0 %v100
    %114 = vmatprep.subr.bf16.mxu0 0
    %115 = vmatpush1.bf16.msra.mxu0 %v99
    %116 = vmatprep.subr.bf16.mxu0 0
    %117 = vmatpush1.bf16.msra.mxu0 %v98
    %118 = vmatprep.subr.bf16.mxu0 0
    %119 = vmatpush1.bf16.msra.mxu0 %v97
    %120 = vmatprep.subr.bf16.mxu0 0
    %121 = vmatpush1.bf16.msra.mxu0 %v96
    %122 = vmatprep.subr.bf16.mxu0 0
    %123 = vmatpush1.bf16.msra.mxu0 %v95
    %124 = vmatprep.subr.bf16.mxu0 0
    %125 = vmatpush1.bf16.msra.mxu0 %v94
    %126 = vmatprep.subr.bf16.mxu0 0
    %127 = vmatpush2.bf16.msra.mxu0 0
    %128 = vmatprep.subr.bf16.mxu0 0
    %129 = vmatpush2.bf16.msra.mxu0 0
    %130 = vmatprep.subr.bf16.mxu0 0
    %131 = vmatpush2.bf16.msra.mxu0 0
    %132 = vmatprep.subr.bf16.mxu0 0
    %133 = vmatpush2.bf16.msra.mxu0 0
    %134 = vmatprep.subr.bf16.mxu0 0
    %135 = vmatpush2.bf16.msra.mxu0 0
    %136 = vmatprep.subr.bf16.mxu0 0
    %137 = vmatpush2.bf16.msra.mxu0 0
    %138 = vmatprep.subr.bf16.mxu0 0
    %139 = vmatpush2.bf16.msra.mxu0 0
    %140 = vmatprep.subr.bf16.mxu0 0
    %141 = vmatpush2.bf16.msra.mxu0 0
    %142 = vmatprep.mubr.bf16.mxu0 0
    %143 = vmatmul.mubr.bf16.gmra.mxu0 %v60
    %v144 = vpop.f32.mrf.mxu0
    %v145 = vadd.f32 0.0, %v144
    %v146 = vpop.f32.mrf.mxu0
    %v147 = vpop.f32.mrf.mxu0
    %v148 = vadd.f32 0.0, %v147
    %v149 = vpop.f32.mrf.mxu0
    %150 = vdwg.mxu0
    %p151 = scmp.eq.s32.totalorder 0, 0
    // Predicated region
    $region22: #{tpu_custom_call.1} parent=1 // pred_check
      %p152 = pneg %p151
    $region23: #{tpu_custom_call.1} parent=1 // pred_check_branch
      %154 = sbr.rel (%p152) target = $region25
    $region24: #{tpu_custom_call.1} parent=1 // pred_region
      %155 = vst [vmem:[#allocation5] sm:$0xff] %v145
      %156 = vst [vmem:[#allocation5 + $0x8] sm:$0xff] %v148
    $region25: #{tpu_custom_call.1} parent=1 // pred_fallthru
      _
    %p157 = scmp.gt.s32.totalorder 0, 0
    // Predicated region
    $region26: #{tpu_custom_call.1} parent=1 // pred_check
      %p158 = pneg %p157
    $region27: #{tpu_custom_call.1} parent=1 // pred_check_branch
      %160 = sbr.rel (%p158) target = $region29
    $region28: #{tpu_custom_call.1} parent=1 // pred_region
      %v161 = vld [vmem:[#allocation5] sm:$0xff]
      %v162 = vld [vmem:[#allocation5 + $0x8] sm:$0xff]
      %v163 = vadd.f32 %v161, %v145
      %v164 = vadd.f32 %v162, %v148
      %165 = vst [vmem:[#allocation5] sm:$0xff] %v163
      %166 = vst [vmem:[#allocation5 + $0x8] sm:$0xff] %v164
    $region29: #{tpu_custom_call.1} parent=1 // pred_fallthru
      _
    // Predicated region
    $region30: #{tpu_custom_call.1} parent=1 // pred_check
      %p167 = pneg %p151
    $region31: #{tpu_custom_call.1} parent=1 // pred_check_branch
      %169 = sbr.rel (%p167) target = $region33
    $region32: #{tpu_custom_call.1} parent=1 // pred_region
      %v170 = vld [vmem:[%s3] sm:$0x1]
      %v171 = vld [vmem:[%s3 + $0x1] sm:$0x1]
      %v172 = vld [vmem:[%s3 + $0x2] sm:$0x1]
      %v173 = vld [vmem:[%s3 + $0x3] sm:$0x1]
      %v174 = vld [vmem:[%s2] sm:$0xff]
      %v175 = vld [vmem:[%s2 + $0x8] sm:$0xff]
      %177 = vset.pattern.permute.xlu0 0
      %178 = vperm.xlu0 %177, %v174
      %v179 = vpop.permute.xlu0 %178
      %182 = vset.pattern.permute.xlu0 0
      %183 = vperm.xlu0 %182, %v175
      %v184 = vpop.permute.xlu0 %183
      %v186 = vlaneseq
      %v187 = vshrl.u32 %v186, 7
      %v188 = vsub.s32 0, %v187
      %v189 = vrot.slane %v171, %v188
      %v190 = vmul.f32 %v179, %v189
      %v191 = vmul.f32 %v184, %v189
      %192 = vset.pattern.permute.xlu0 1
      %193 = vperm.xlu0 %192, %v174
      %v194 = vpop.permute.xlu0 %193
      %196 = vset.pattern.permute.xlu0 1
      %197 = vperm.xlu0 %196, %v175
      %v198 = vpop.permute.xlu0 %197
      %v200 = vlaneseq
      %v201 = vshrl.u32 %v200, 7
      %v202 = vsub.s32 0, %v201
      %v203 = vrot.slane %v172, %v202
      %v204 = vmul.f32 %v194, %v203
      %v205 = vmul.f32 %v198, %v203
      %v206 = vadd.f32 %v190, %v204
      %v207 = vadd.f32 %v191, %v205
      %v208 = vlaneseq
      %v209 = vshrl.u32 %v208, 7
      %v210 = vsub.s32 0, %v209
      %v211 = vrot.slane %v173, %v210
      %v212 = vadd.f32 %v206, %v211
      %v213 = vadd.f32 %v207, %v211
      %v214 = vld [vmem:[#allocation5] sm:$0xff]
      %v215 = vld [vmem:[#allocation5 + $0x8] sm:$0xff]
      %v216 = vand.u32 2147483647, %v212
      %vm217 = vcmp.le.f32.partialorder %v216, 0.7853982
      %vm218 = vcmp.lt.s32.totalorder %v212, 0
      %v219 = vand.u32 %v212, 2139095040
      %v220 = vshrl.u32 %v219, 23
      %v221 = vsub.s32 %v220, 127
      %v222 = vand.u32 2147483647, %v212
      %v223 = vand.u32 %v222, 8388607
      %v224 = vor.u32 %v223, 8388608
      %v225 = vsub.s32 0, %v224
      %v226 = vadd.s32 %v221, 1
      %vm227 = vcmp.gt.s32.totalorder %v226, 0
      %v228 = vsel %vm227, %v226, 0
      %v229 = vshrl.u32 %v228, 5
      %v230 = vand.u32 %v228, 31
      %v231 = vsub.s32 32, %v230
      %v232 = vshrl.u32 683565275, %v231
      %v233 = vshll.u32 683565275, %v230
      %v234 = vshrl.u32 2475754826, %v231
      %v235 = vor.u32 %v233, %v234
      %v236 = vshll.u32 2475754826, %v230
      %v237 = vshrl.u32 2131351028, %v231
      %v238 = vor.u32 %v236, %v237
      %v239 = vshll.u32 2131351028, %v230
      %v240 = vshrl.u32 2102212464, %v231
      %v241 = vor.u32 %v239, %v240
      %v242 = vshll.u32 2102212464, %v230
      %v243 = vshrl.u32 920167782, %v231
      %v244 = vor.u32 %v242, %v243
      %v245 = vshll.u32 920167782, %v230
      %v246 = vshrl.u32 1326507024, %v231
      %v247 = vor.u32 %v245, %v246
      %vm248 = vcmp.lt.s32.totalorder %v229, 1
      %vm249 = vcmp.lt.s32.totalorder %v229, 2
      %vm250 = vcmp.lt.s32.totalorder %v229, 3
      %vm251 = vcmp.lt.s32.totalorder %v229, 4
      %v252 = vsel %vm248, %v232, %v235
      %v253 = vsel %vm251, %v241, 2102212464
      %v254 = vsel %vm250, %v238, %v253
      %v255 = vsel %vm249, %v252, %v254
      %v256 = vsel %vm248, %v235, %v238
      %v257 = vsel %vm251, %v244, 920167782
      %v258 = vsel %vm250, %v241, %v257
      %v259 = vsel %vm249, %v256, %v258
      %v260 = vsel %vm248, %v238, %v241
      %v261 = vsel %vm251, %v247, 1326507024
      %v262 = vsel %vm250, %v244, %v261
      %v263 = vsel %vm249, %v260, %v262
      %v264 = vshll.u32 %v224, 8
      %v265 = vmul.u32.u64.compose %v264, %v263
      %v266 = vextract.low.u32 %v265
      %v267 = vextract.high.u32 %v265
      %v268 = vmul.u32.u64.compose %v264, %v259
      %v269 = vextract.low.u32 %v268
      %v270 = vextract.high.u32 %v268
      %v271 = vmul.u32 %v264, %v255
      %v272 = vadd.s32 %v267, %v269
      %vm273 = vc.u32 %v267, %v269
      %v274 = vadd.s32 %v270, 1
      %v275 = vsel %vm273, %v274, %v270
      %v276 = vadd.s32 %v271, %v275
      %v277 = vadd.s32 %v276, 536870912
      %v278 = vshrl.u32 %v277, 30
      %v279 = vshll.u32 %v278, 30
      %v280 = vsub.s32 %v276, %v279
      %vm281 = vcmp.lt.s32.totalorder %v280, 0
      %v282 = vsub.s32 0, %v280
      %v283 = vsel %vm281, %v282, %v280
      %v284 = vclz %v283
      %v285 = vsub.s32 %v284, 2
      %vm286 = vcmp.gt.s32.totalorder 0, %v285
      %v287 = vsel %vm286, 0, %v285
      %v288 = vsub.s32 32, %v287
      %v289 = vshll.u32 %v280, %v287
      %v290 = vshrl.u32 %v272, %v288
      %v291 = vor.u32 %v289, %v290
      %v292 = vsub.s32 4294967266, %v287
      %v293 = vadd.s32 %v292, 127
      %v294 = vshll.u32 %v293, 23
      %v295 = vor.u32 4788187, %v294
      %v296 = vand.u32 2147483647, %v295
      %v298 = vcvt.s32.f32 %v291
      %v299 = vmul.f32 %v298, %v296
      %v300 = vxor.u32 %v299, 2147483648
      %v301 = vsel %vm218, %v300, %v299
      %v302 = vsub.s32 4, %v278
      %v303 = vsel %vm218, %v302, %v278
      %v304 = vsel %vm217, %v212, %v301
      %v305 = vsel %vm217, 0, %v303
      %v306 = vcosq.f32.pop %v304
      %v307 = vsinq.f32.pop %v304
      %vm308 = vweird.f32 %v212
      %v309 = vadd.s32 %v305, 3
      %v310 = vand.u32 %v309, 3
      %vm311 = vcmp.lt.s32.totalorder %v310, 2
      %vm312 = vcmp.eq.s32.totalorder %v310, 0
      %v313 = vxor.u32 %v307, 2147483648
      %v314 = vsel %vm312, %v306, %v313
      %vm315 = vcmp.eq.s32.totalorder %v310, 2
      %v316 = vxor.u32 %v306, 2147483648
      %v317 = vsel %vm315, %v316, %v307
      %v318 = vsel %vm311, %v314, %v317
      %v319 = vsel %vm308, nan, %v318
      %v320 = vand.u32 2147483647, %v213
      %vm321 = vcmp.le.f32.partialorder %v320, 0.7853982
      %vm322 = vcmp.lt.s32.totalorder %v213, 0
      %v323 = vand.u32 %v213, 2139095040
      %v324 = vshrl.u32 %v323, 23
      %v325 = vsub.s32 %v324, 127
      %v326 = vand.u32 2147483647, %v213
      %v327 = vand.u32 %v326, 8388607
      %v328 = vor.u32 %v327, 8388608
      %v329 = vsub.s32 0, %v328
      %v330 = vadd.s32 %v325, 1
      %vm331 = vcmp.gt.s32.totalorder %v330, 0
      %v332 = vsel %vm331, %v330, 0
      %v333 = vshrl.u32 %v332, 5
      %v334 = vand.u32 %v332, 31
      %v335 = vsub.s32 32, %v334
      %v336 = vshrl.u32 683565275, %v335
      %v337 = vshll.u32 683565275, %v334
      %v338 = vshrl.u32 2475754826, %v335
      %v339 = vor.u32 %v337, %v338
      %v340 = vshll.u32 2475754826, %v334
      %v341 = vshrl.u32 2131351028, %v335
      %v342 = vor.u32 %v340, %v341
      %v343 = vshll.u32 2131351028, %v334
      %v344 = vshrl.u32 2102212464, %v335
      %v345 = vor.u32 %v343, %v344
      %v346 = vshll.u32 2102212464, %v334
      %v347 = vshrl.u32 920167782, %v335
      %v348 = vor.u32 %v346, %v347
      %v349 = vshll.u32 920167782, %v334
      %v350 = vshrl.u32 1326507024, %v335
      %v351 = vor.u32 %v349, %v350
      %vm352 = vcmp.lt.s32.totalorder %v333, 1
      %vm353 = vcmp.lt.s32.totalorder %v333, 2
      %vm354 = vcmp.lt.s32.totalorder %v333, 3
      %vm355 = vcmp.lt.s32.totalorder %v333, 4
      %v356 = vsel %vm352, %v336, %v339
      %v357 = vsel %vm355, %v345, 2102212464
      %v358 = vsel %vm354, %v342, %v357
      %v359 = vsel %vm353, %v356, %v358
      %v360 = vsel %vm352, %v339, %v342
      %v361 = vsel %vm355, %v348, 920167782
      %v362 = vsel %vm354, %v345, %v361
      %v363 = vsel %vm353, %v360, %v362
      %v364 = vsel %vm352, %v342, %v345
      %v365 = vsel %vm355, %v351, 1326507024
      %v366 = vsel %vm354, %v348, %v365
      %v367 = vsel %vm353, %v364, %v366
      %v368 = vshll.u32 %v328, 8
      %v369 = vmul.u32.u64.compose %v368, %v367
      %v370 = vextract.low.u32 %v369
      %v371 = vextract.high.u32 %v369
      %v372 = vmul.u32.u64.compose %v368, %v363
      %v373 = vextract.low.u32 %v372
      %v374 = vextract.high.u32 %v372
      %v375 = vmul.u32 %v368, %v359
      %v376 = vadd.s32 %v371, %v373
      %vm377 = vc.u32 %v371, %v373
      %v378 = vadd.s32 %v374, 1
      %v379 = vsel %vm377, %v378, %v374
      %v380 = vadd.s32 %v375, %v379
      %v381 = vadd.s32 %v380, 536870912
      %v382 = vshrl.u32 %v381, 30
      %v383 = vshll.u32 %v382, 30
      %v384 = vsub.s32 %v380, %v383
      %vm385 = vcmp.lt.s32.totalorder %v384, 0
      %v386 = vsub.s32 0, %v384
      %v387 = vsel %vm385, %v386, %v384
      %v388 = vclz %v387
      %v389 = vsub.s32 %v388, 2
      %vm390 = vcmp.gt.s32.totalorder 0, %v389
      %v391 = vsel %vm390, 0, %v389
      %v392 = vsub.s32 32, %v391
      %v393 = vshll.u32 %v384, %v391
      %v394 = vshrl.u32 %v376, %v392
      %v395 = vor.u32 %v393, %v394
      %v396 = vsub.s32 4294967266, %v391
      %v397 = vadd.s32 %v396, 127
      %v398 = vshll.u32 %v397, 23
      %v399 = vor.u32 4788187, %v398
      %v400 = vand.u32 2147483647, %v399
      %v402 = vcvt.s32.f32 %v395
      %v403 = vmul.f32 %v402, %v400
      %v404 = vxor.u32 %v403, 2147483648
      %v405 = vsel %vm322, %v404, %v403
      %v406 = vsub.s32 4, %v382
      %v407 = vsel %vm322, %v406, %v382
      %v408 = vsel %vm321, %v213, %v405
      %v409 = vsel %vm321, 0, %v407
      %v410 = vcosq.f32.pop %v408
      %v411 = vsinq.f32.pop %v408
      %vm412 = vweird.f32 %v213
      %v413 = vadd.s32 %v409, 3
      %v414 = vand.u32 %v413, 3
      %vm415 = vcmp.lt.s32.totalorder %v414, 2
      %vm416 = vcmp.eq.s32.totalorder %v414, 0
      %v417 = vxor.u32 %v411, 2147483648
      %v418 = vsel %vm416, %v410, %v417
      %vm419 = vcmp.eq.s32.totalorder %v414, 2
      %v420 = vxor.u32 %v410, 2147483648
      %v421 = vsel %vm419, %v420, %v411
      %v422 = vsel %vm415, %v418, %v421
      %v423 = vsel %vm412, nan, %v422
      %v424 = vlaneseq
      %v425 = vshrl.u32 %v424, 7
      %v426 = vsub.s32 0, %v425
      %v427 = vrot.slane %v170, %v426
      %v428 = vadd.f32 %v427, %v319
      %v429 = vadd.f32 %v427, %v423
      %v430 = vadd.f32 %v214, %v428
      %v431 = vadd.f32 %v215, %v429
      %432 = vst [vmem:[#allocation5] sm:$0xff] %v430
      %433 = vst [vmem:[#allocation5 + $0x8] sm:$0xff] %v431
    $region33: #{tpu_custom_call.1} parent=1 // pred_fallthru
      _
    // Predicated region
    $region34: #{tpu_custom_call.1} parent=1 // pred_check
      _
    $region35: #{tpu_custom_call.1} parent=1 // pred_check_branch
      %435 = sbr.rel (0) target = $region37
    $region36: #{tpu_custom_call.1} parent=1 // pred_region
      %s437 = ssub.s32 256, 256
      %438 = vsyncadd [#allocation4], %s437
      %s439 = sshll.u32 [#allocation5], 4
      %s440 = int_to_ptr.vmem [resolvable:$true] %s439
      %445 = dma.vmem_to_hbm [thread:$0]  %s440, 256, %s4, [#allocation4], 128, 128, 8
    $region37: #{tpu_custom_call.1} parent=1 // pred_fallthru
      _
    // Predicated region
    $region38: #{tpu_custom_call.1} parent=1 // pred_check
      _
    $region39: #{tpu_custom_call.1} parent=1 // pred_check_branch
      %447 = sbr.rel (0) target = $region41
    $region40: #{tpu_custom_call.1} parent=1 // pred_region
      %448 = dma.done [#allocation4], 256
    $region41: #{tpu_custom_call.1} parent=1 // pred_fallthru
      _
    %449 = vsyncpa [#allocation3], 1
    %450 = vsyncpa [#allocation4], 1

</llo_original>
